<compile_context>
chip_gen: v7x
topology: tpu7x:2x2x1
jax: 0.10.0
libtpu: 0.0.40
codegen_flags: <defaults>
</compile_context>

<pallas_src>
import jax
import jax.numpy as jnp
from jax.experimental import pallas as pl
from jax.experimental.pallas import tpu as pltpu

IN_FEATURES = 1280
HIDDEN = 64
NUM_CLASSES = 8  # configs.num_classes_target (small synthetic value)


def _round_up(x, m):
    return ((x + m - 1) // m) * m


def _mlp_kernel(x_ref, w1_ref, b1_ref, w2_ref, b2_ref, o_ref):
    # In-kernel bf16 cast of the streaming operand (VPU work, hidden under the
    # activation DMA) -> only one 4 B/elem HBM read for the activations.
    x = x_ref[...].astype(jnp.bfloat16)
    # Layer 1 on the MXU: (tile_b, 1280) @ (1280, 64), f32 accumulation.
    h = jnp.dot(x, w1_ref[...], preferred_element_type=jnp.float32)
    h = h + b1_ref[...]
    # Exact sigmoid: for very negative h, exp(-h) -> inf and 1/(1+inf) -> 0.
    h = 1.0 / (1.0 + jnp.exp(-h))
    # Layer 2: (tile_b, 64) @ (64, 128) lane-dense matmul, f32 accumulation.
    out = jnp.dot(h, w2_ref[...], preferred_element_type=jnp.float32)
    out = out + b2_ref[...]
    # Store only the valid class columns; output array is (B, num_classes).
    o_ref[...] = out[:, : o_ref.shape[1]].astype(o_ref.dtype)


def target_classifier_forward(emb, w1_t, b1, w2_t, b2, *, tile_b=1024):
    """emb: (B, ...) with prod(...) == 1280. Returns (B, num_classes) f32.

    Weights are stored pre-transposed: w1_t (1280, 64), w2_t (64, C).
    tile_b: batch tile. 1024 rows (f32 stream) double-buffered is ~10 MiB of
    VMEM — inside the default scoped budget on v5e/v6e/v7x; larger tiles are
    allowed via the explicitly passed vmem_limit_bytes.
    """
    B = emb.shape[0]
    emb_flat = emb.reshape(B, -1)
    assert emb_flat.shape[1] == IN_FEATURES
    num_classes = w2_t.shape[1]

    # Second-layer weights padded to a lane-dense 128 columns for the matmul;
    # the kernel stores only the first num_classes columns.
    c_pad = _round_up(num_classes, 128)
    w2_p = jnp.pad(w2_t.astype(jnp.float32), ((0, 0), (0, c_pad - num_classes)))
    b2_p = jnp.pad(b2.astype(jnp.float32), (0, c_pad - num_classes)).reshape(1, c_pad)
    w1 = w1_t.astype(jnp.bfloat16)               # pinned in VMEM, DMA'd once
    b1_r = b1.reshape(1, HIDDEN).astype(jnp.float32)

    # Stream activations in their incoming dtype — no wrapper-side cast and no
    # whole-array tail pad (ragged final block is handled by Pallas).
    x = emb_flat
    x_itemsize = x.dtype.itemsize
    sublane = {4: 8, 2: 16, 1: 32}.get(x_itemsize, 8)

    tile = int(min(tile_b, _round_up(B, sublane)))
    tile = max(sublane, _round_up(tile, sublane))
    grid = (pl.cdiv(B, tile),)

    # VMEM: the double-buffered activation tile dominates; weights are tiny.
    weight_bytes = (w1.size * 2 + b1_r.size * 4 + w2_p.size * 4 + b2_p.size * 4)
    vmem_needed = 2 * tile * (IN_FEATURES * x_itemsize + num_classes * 4) + weight_bytes
    vmem_limit = int(min(max(vmem_needed + (4 << 20), 16 << 20), 96 << 20))

    cost = pl.CostEstimate(
        flops=2 * B * (IN_FEATURES * HIDDEN + HIDDEN * c_pad),
        transcendentals=B * HIDDEN,
        bytes_accessed=B * (IN_FEATURES * x_itemsize + num_classes * 4) + weight_bytes,
    )

    out = pl.pallas_call(
        _mlp_kernel,
        out_shape=jax.ShapeDtypeStruct((B, num_classes), jnp.float32),
        grid_spec=pltpu.PrefetchScalarGridSpec(
            num_scalar_prefetch=0,
            grid=grid,
            in_specs=[
                # Activations: tiled over batch (auto double-buffered).
                pl.BlockSpec((tile, IN_FEATURES), lambda i: (i, 0)),
                # Weights / biases: constant index_map -> VMEM-resident.
                pl.BlockSpec((IN_FEATURES, HIDDEN), lambda i: (0, 0)),
                pl.BlockSpec((1, HIDDEN), lambda i: (0, 0)),
                pl.BlockSpec((HIDDEN, c_pad), lambda i: (0, 0)),
                pl.BlockSpec((1, c_pad), lambda i: (0, 0)),
            ],
            out_specs=pl.BlockSpec((tile, num_classes), lambda i: (i, 0)),
        ),
        compiler_params=pltpu.CompilerParams(
            dimension_semantics=("parallel",),   # megacore sharding on v7x
            vmem_limit_bytes=vmem_limit,
        ),
        cost_estimate=cost,
    )(x, w1, b1_r, w2_p, b2_p)
    return out


def init_params(key):
    """Deterministic param init matching nn.Linear shapes (stored transposed)."""
    k1, k2, k3, k4 = jax.random.split(key, 4)
    # nn.Linear(1280, 64): weight (64, 1280) -> stored as (1280, 64)
    bound1 = 1.0 / (IN_FEATURES ** 0.5)
    w1_t = jax.random.uniform(k1, (IN_FEATURES, HIDDEN), jnp.float32, -bound1, bound1)
    b1 = jax.random.uniform(k2, (HIDDEN,), jnp.float32, -bound1, bound1)
    # nn.Linear(64, num_classes): weight (C, 64) -> stored as (64, C)
    bound2 = 1.0 / (HIDDEN ** 0.5)
    w2_t = jax.random.uniform(k3, (HIDDEN, NUM_CLASSES), jnp.float32, -bound2, bound2)
    b2 = jax.random.uniform(k4, (NUM_CLASSES,), jnp.float32, -bound2, bound2)
    return w1_t, b1, w2_t, b2


def _reference(emb, w1_t, b1, w2_t, b2):
    # Matches the kernel's precision policy: bf16 first-layer operands,
    # f32 accumulation / second layer.
    x = emb.reshape(emb.shape[0], -1).astype(jnp.bfloat16).astype(jnp.float32)
    w1 = w1_t.astype(jnp.bfloat16).astype(jnp.float32)
    h = jax.nn.sigmoid(x @ w1 + b1)
    return h @ w2_t + b2


if __name__ == "__main__":
    key = jax.random.PRNGKey(0)
    k_emb, k_params, k_big = jax.random.split(key, 3)
    w1_t, b1, w2_t, b2 = init_params(k_params)

    # --- small case, as in the module: (B=2, 10, 128) -> flattens to (2, 1280)
    emb = jax.random.normal(k_emb, (2, 10, 128), dtype=jnp.float32)
    pred = target_classifier_forward(emb, w1_t, b1, w2_t, b2)
    pred = jax.block_until_ready(pred)
    ref = _reference(emb, w1_t, b1, w2_t, b2)
    assert pred.shape == (2, NUM_CLASSES)
    assert jnp.allclose(pred, ref, atol=1e-2, rtol=1e-2)

    # --- multi-tile + ragged-final-block case: B=40, tile=16 -> 3 grid steps,
    # last block has only 8 valid rows (exercises the no-pad path).
    emb_big = jax.random.normal(k_big, (40, 10, 128), dtype=jnp.float32)
    pred_big = target_classifier_forward(emb_big, w1_t, b1, w2_t, b2, tile_b=16)
    pred_big = jax.block_until_ready(pred_big)
    ref_big = _reference(emb_big, w1_t, b1, w2_t, b2)
    assert pred_big.shape == (40, NUM_CLASSES)
    assert jnp.allclose(pred_big, ref_big, atol=1e-2, rtol=1e-2)

    print("KERNEL_OK")
</pallas_src>

<mosaic_0001>
module attributes {stable_mosaic.version = 11 : i64} {
  func.func @_mlp_kernel(%arg0: i32, %arg1: memref<8x1280xf32, #tpu.memory_space<vmem>>, %arg2: memref<1280x64xbf16, #tpu.memory_space<vmem>>, %arg3: memref<1x64xf32, #tpu.memory_space<vmem>>, %arg4: memref<64x128xf32, #tpu.memory_space<vmem>>, %arg5: memref<1x128xf32, #tpu.memory_space<vmem>>, %arg6: memref<8x8xf32, #tpu.memory_space<vmem>>) attributes {dimension_semantics = [#tpu.dimension_semantics<parallel>], iteration_bounds = array<i64: 1>, scalar_prefetch = 0 : i64, scratch_operands = 0 : i64, tpu.core_type = #tpu.core_type<tc>, window_params = [{transform_indices = @transform_0, window_bounds = array<i64: 8, 1280>}, {pipeline_mode = #tpu.pipeline_mode<synchronous>, transform_indices = @transform_1, window_bounds = array<i64: 1280, 64>}, {pipeline_mode = #tpu.pipeline_mode<synchronous>, transform_indices = @transform_2, window_bounds = array<i64: 1, 64>}, {pipeline_mode = #tpu.pipeline_mode<synchronous>, transform_indices = @transform_3, window_bounds = array<i64: 64, 128>}, {pipeline_mode = #tpu.pipeline_mode<synchronous>, transform_indices = @transform_4, window_bounds = array<i64: 1, 128>}, {transform_indices = @transform_5, window_bounds = array<i64: 8, 8>}]} {
    %c0 = arith.constant 0 : index
    %c0_0 = arith.constant 0 : index
    %0 = vector.load %arg1[%c0, %c0_0] : memref<8x1280xf32, #tpu.memory_space<vmem>>, vector<8x1280xf32>
    %1 = arith.truncf %0 : vector<8x1280xf32> to vector<8x1280xbf16>
    %c0_1 = arith.constant 0 : index
    %c0_2 = arith.constant 0 : index
    %2 = vector.load %arg2[%c0_1, %c0_2] : memref<1280x64xbf16, #tpu.memory_space<vmem>>, vector<1280x64xbf16>
    %cst = arith.constant dense<0.000000e+00> : vector<8x64xf32>
    %3 = tpu.matmul %1, %2, %cst {dimension_numbers = #tpu.dot_dimension_numbers<[1], [0], [0], [1], [0, 0, 1, 1], [], []>} : vector<8x1280xbf16>, vector<1280x64xbf16>, vector<8x64xf32> -> vector<8x64xf32>
    %c0_3 = arith.constant 0 : index
    %c0_4 = arith.constant 0 : index
    %4 = vector.load %arg3[%c0_3, %c0_4] : memref<1x64xf32, #tpu.memory_space<vmem>>, vector<1x64xf32>
    %5 = vector.broadcast %4 : vector<1x64xf32> to vector<8x64xf32>
    %6 = arith.addf %3, %5 : vector<8x64xf32>
    %cst_5 = arith.constant 0.000000e+00 : f32
    %7 = vector.broadcast %cst_5 : f32 to vector<8x64xf32>
    %8 = arith.subf %7, %6 : vector<8x64xf32>
    %9 = math.exp %8 : vector<8x64xf32>
    %cst_6 = arith.constant 1.000000e+00 : f32
    %10 = vector.broadcast %cst_6 : f32 to vector<8x64xf32>
    %11 = arith.addf %10, %9 : vector<8x64xf32>
    %cst_7 = arith.constant 1.000000e+00 : f32
    %12 = vector.broadcast %cst_7 : f32 to vector<8x64xf32>
    %13 = arith.divf %12, %11 : vector<8x64xf32>
    %c0_8 = arith.constant 0 : index
    %c0_9 = arith.constant 0 : index
    %14 = vector.load %arg4[%c0_8, %c0_9] : memref<64x128xf32, #tpu.memory_space<vmem>>, vector<64x128xf32>
    %cst_10 = arith.constant dense<0.000000e+00> : vector<8x128xf32>
    %15 = tpu.matmul %13, %14, %cst_10 {dimension_numbers = #tpu.dot_dimension_numbers<[1], [0], [0], [1], [0, 0, 1, 1], [], []>} : vector<8x64xf32>, vector<64x128xf32>, vector<8x128xf32> -> vector<8x128xf32>
    %c0_11 = arith.constant 0 : index
    %c0_12 = arith.constant 0 : index
    %16 = vector.load %arg5[%c0_11, %c0_12] : memref<1x128xf32, #tpu.memory_space<vmem>>, vector<1x128xf32>
    %17 = vector.broadcast %16 : vector<1x128xf32> to vector<8x128xf32>
    %18 = arith.addf %15, %17 : vector<8x128xf32>
    %19 = vector.extract_strided_slice %18 {offsets = [0, 0], sizes = [8, 8], strides = [1, 1]} : vector<8x128xf32> to vector<8x8xf32>
    %c0_13 = arith.constant 0 : index
    %c0_14 = arith.constant 0 : index
    %20 = vector.load %arg6[%c0_13, %c0_14] : memref<8x8xf32, #tpu.memory_space<vmem>>, vector<8x8xf32>
    tpu.vector_store %arg6[%c0_13, %c0_14], %19 {strides = array<i32>} : memref<8x8xf32, #tpu.memory_space<vmem>>, vector<8x8xf32>,
    return
  }
  func.func @transform_0(%arg0: i32) -> (i32, i32) {
    %c0_i32 = arith.constant 0 : i32
    %c0_i32_0 = arith.constant 0 : i32
    return %arg0, %c0_i32 : i32, i32
  }
  func.func @transform_1(%arg0: i32) -> (i32, i32) {
    %c0_i32 = arith.constant 0 : i32
    %c0_i32_0 = arith.constant 0 : i32
    %c0_i32_1 = arith.constant 0 : i32
    return %c0_i32, %c0_i32_0 : i32, i32
  }
  func.func @transform_2(%arg0: i32) -> (i32, i32) {
    %c0_i32 = arith.constant 0 : i32
    %c0_i32_0 = arith.constant 0 : i32
    %c0_i32_1 = arith.constant 0 : i32
    return %c0_i32, %c0_i32_0 : i32, i32
  }
  func.func @transform_3(%arg0: i32) -> (i32, i32) {
    %c0_i32 = arith.constant 0 : i32
    %c0_i32_0 = arith.constant 0 : i32
    %c0_i32_1 = arith.constant 0 : i32
    return %c0_i32, %c0_i32_0 : i32, i32
  }
  func.func @transform_4(%arg0: i32) -> (i32, i32) {
    %c0_i32 = arith.constant 0 : i32
    %c0_i32_0 = arith.constant 0 : i32
    %c0_i32_1 = arith.constant 0 : i32
    return %c0_i32, %c0_i32_0 : i32, i32
  }
  func.func @transform_5(%arg0: i32) -> (i32, i32) {
    %c0_i32 = arith.constant 0 : i32
    %c0_i32_0 = arith.constant 0 : i32
    return %arg0, %c0_i32 : i32, i32
  }
}

</mosaic_0001>

<llo_original>
// kernel: tpu_custom_call.1
$region0: #{tpu_custom_call.1}
  #allocation0 [shape = 'u32[]', space=smem, size = 0x4, offset = 0x4, fixed_abs, tag = 'smem constant byte address 0x4 - core index']
  #allocation1 [shape = 'u32[144,128]{1,0:T(1,128)}', space=vmem, size = 0x12000, scoped, tag = 'internal scratch']
  %s0 = inlined_call_operand.vmem [shape: f32[2,1280], index: 0, kind: input, shape index: {}]
  %s1 = inlined_call_operand.vmem [shape: bf16[1280,64], index: 1, kind: input, shape index: {}]
  %s2 = inlined_call_operand.vmem [shape: f32[1,64], index: 2, kind: input, shape index: {}]
  %s3 = inlined_call_operand.vmem [shape: f32[64,128], index: 3, kind: input, shape index: {}]
  %s4 = inlined_call_operand.vmem [shape: f32[1,128], index: 4, kind: input, shape index: {}]
  %s5 = inlined_call_operand.hbm [shape: f32[2,8], index: 5, kind: output, shape index: {}]
  %s6 = sld [smem:[#allocation0]]
  $region30: #{tpu_custom_call.1} parent=0
    _
  %s8 = ssub.s32 1, %s6
  %s9 = scalar_select 0, %s8, %s6
  $region1: #{tpu_custom_call.1} parent=0
    #allocation2 [shape = 'u8[4096]{0}', space=vmem, size = 0x1000, scoped, tag = 'output window, operand 0, single buffered']
    #allocation3 [shape = 's32[1]{0}', space=sflag, size = 0x4, scoped, tag = 'scoped memory for tpu_custom_call.1']
    %10 = vsyncpa [#allocation3], 0
    // Predicated region
    $region2: #{tpu_custom_call.1} parent=1 // pred_check
      _
    $region3: #{tpu_custom_call.1} parent=1 // pred_check_branch
      %12 = sbr.rel (0) target = $region5
    $region4: #{tpu_custom_call.1} parent=1 // pred_region
      _
    $region5: #{tpu_custom_call.1} parent=1 // pred_fallthru
      _
    // Predicated region
    $region6: #{tpu_custom_call.1} parent=1 // pred_check
      _
    $region7: #{tpu_custom_call.1} parent=1 // pred_check_branch
      %14 = sbr.rel (0) target = $region9
    $region8: #{tpu_custom_call.1} parent=1 // pred_region
      _
    $region9: #{tpu_custom_call.1} parent=1 // pred_fallthru
      _
    // Predicated region
    $region10: #{tpu_custom_call.1} parent=1 // pred_check
      _
    $region11: #{tpu_custom_call.1} parent=1 // pred_check_branch
      %16 = sbr.rel (0) target = $region13
    $region12: #{tpu_custom_call.1} parent=1 // pred_region
      _
    $region13: #{tpu_custom_call.1} parent=1 // pred_fallthru
      _
    // Predicated region
    $region14: #{tpu_custom_call.1} parent=1 // pred_check
      _
    $region15: #{tpu_custom_call.1} parent=1 // pred_check_branch
      %18 = sbr.rel (0) target = $region17
    $region16: #{tpu_custom_call.1} parent=1 // pred_region
      _
    $region17: #{tpu_custom_call.1} parent=1 // pred_fallthru
      _
    // Predicated region
    $region18: #{tpu_custom_call.1} parent=1 // pred_check
      _
    $region19: #{tpu_custom_call.1} parent=1 // pred_check_branch
      %20 = sbr.rel (0) target = $region21
    $region20: #{tpu_custom_call.1} parent=1 // pred_region
      _
    $region21: #{tpu_custom_call.1} parent=1 // pred_fallthru
      _
    %v22 = vld [vmem:[%s0] sm:$0xff]
    %v23 = vld [vmem:[%s0 + $0x8] sm:$0xff]
    %v24 = vld [vmem:[%s0 + $0x10] sm:$0xf]
    %v25 = vld [vmem:[%s0 + $0x14] sm:$0xff]
    %v26 = vld [vmem:[%s0 + $0x1c] sm:$0xff]
    %v27 = vld [vmem:[%s0 + $0x24] sm:$0xf]
    %v28 = vld [vmem:[%s0 + $0x28] sm:$0xff]
    %v29 = vld [vmem:[%s0 + $0x30] sm:$0xff]
    %v30 = vld [vmem:[%s0 + $0x38] sm:$0xf]
    %v31 = vld [vmem:[%s0 + $0x3c] sm:$0xff]
    %v32 = vld [vmem:[%s0 + $0x44] sm:$0xff]
    %v33 = vld [vmem:[%s0 + $0x4c] sm:$0xf]
    %v46 = vcombine.low %v22, %v25
    %v47 = vcombine.high %v22, %v25
    %v48 = vcombine.low %v28, %v31
    %v49 = vcombine.high %v28, %v31
    %v51 = vunpack.c.l.s4 1983009808
    %v52 = vunpack.c.0.s8 %v51
    %v53 = vlaneseq
    %v54 = vshrl.u32 %v53, 7
    %v55 = vsub.s32 %v52, %v54
    %v56 = vrot.slane %v46, %v55
    %v58 = vunpack.c.l.s4 1983009808
    %v59 = vunpack.c.0.s8 %v58
    %v60 = vlaneseq
    %v61 = vshrl.u32 %v60, 7
    %v62 = vsub.s32 %v59, %v61
    %v63 = vrot.slane %v47, %v62
    %v65 = vunpack.c.l.s4 1983009808
    %v66 = vunpack.c.0.s8 %v65
    %v67 = vlaneseq
    %v68 = vshrl.u32 %v67, 7
    %v69 = vsub.s32 %v66, %v68
    %v70 = vrot.slane %v48, %v69
    %v72 = vunpack.c.l.s4 1983009808
    %v73 = vunpack.c.0.s8 %v72
    %v74 = vlaneseq
    %v75 = vshrl.u32 %v74, 7
    %v76 = vsub.s32 %v73, %v75
    %v77 = vrot.slane %v49, %v76
    %v78 = vcombine.low %v56, %v70
    %v79 = vcombine.high %v56, %v70
    %v80 = vcombine.low %v63, %v77
    %v81 = vcombine.high %v63, %v77
    %v82 = vcombine.low %v23, %v26
    %v83 = vcombine.high %v23, %v26
    %v84 = vcombine.low %v29, %v32
    %v85 = vcombine.high %v29, %v32
    %v87 = vunpack.c.l.s4 1983009808
    %v88 = vunpack.c.0.s8 %v87
    %v89 = vlaneseq
    %v90 = vshrl.u32 %v89, 7
    %v91 = vsub.s32 %v88, %v90
    %v92 = vrot.slane %v82, %v91
    %v94 = vunpack.c.l.s4 1983009808
    %v95 = vunpack.c.0.s8 %v94
    %v96 = vlaneseq
    %v97 = vshrl.u32 %v96, 7
    %v98 = vsub.s32 %v95, %v97
    %v99 = vrot.slane %v83, %v98
    %v101 = vunpack.c.l.s4 1983009808
    %v102 = vunpack.c.0.s8 %v101
    %v103 = vlaneseq
    %v104 = vshrl.u32 %v103, 7
    %v105 = vsub.s32 %v102, %v104
    %v106 = vrot.slane %v84, %v105
    %v108 = vunpack.c.l.s4 1983009808
    %v109 = vunpack.c.0.s8 %v108
    %v110 = vlaneseq
    %v111 = vshrl.u32 %v110, 7
    %v112 = vsub.s32 %v109, %v111
    %v113 = vrot.slane %v85, %v112
    %v114 = vcombine.low %v92, %v106
    %v115 = vcombine.high %v92, %v106
    %v116 = vcombine.low %v99, %v113
    %v117 = vcombine.high %v99, %v113
    %v118 = vcombine.low %v24, %v27
    %v119 = vcombine.low %v30, %v33
    %v121 = vunpack.c.l.s4 1983009808
    %v122 = vunpack.c.0.s8 %v121
    %v123 = vlaneseq
    %v124 = vshrl.u32 %v123, 7
    %v125 = vsub.s32 %v122, %v124
    %v126 = vrot.slane %v118, %v125
    %v128 = vunpack.c.l.s4 1983009808
    %v129 = vunpack.c.0.s8 %v128
    %v130 = vlaneseq
    %v131 = vshrl.u32 %v130, 7
    %v132 = vsub.s32 %v129, %v131
    %v133 = vrot.slane %v119, %v132
    %v134 = vcombine.low %v126, %v133
    %v135 = vcombine.high %v126, %v133
    %v146 = vpack.c.bf16 %v78, %v78
    %v147 = vpack.c.bf16 %v79, %v79
    %v148 = vpack.c.bf16 %v80, %v80
    %v149 = vpack.c.bf16 %v81, %v81
    %v150 = vpack.c.bf16 %v114, %v114
    %v151 = vpack.c.bf16 %v115, %v115
    %v152 = vpack.c.bf16 %v116, %v116
    %v153 = vpack.c.bf16 %v117, %v117
    %v154 = vpack.c.bf16 %v134, %v134
    %v155 = vpack.c.bf16 %v135, %v135
    %v156 = vld [vmem:[%s1] sm:$0xf]
    %v157 = vld [vmem:[%s1 + $0x4] sm:$0xf]
    %v158 = vld [vmem:[%s1 + $0x8] sm:$0xf]
    %v159 = vld [vmem:[%s1 + $0xc] sm:$0xf]
    %v160 = vld [vmem:[%s1 + $0x10] sm:$0xf]
    %v161 = vld [vmem:[%s1 + $0x14] sm:$0xf]
    %v162 = vld [vmem:[%s1 + $0x18] sm:$0xf]
    %v163 = vld [vmem:[%s1 + $0x1c] sm:$0xf]
    %v164 = vld [vmem:[%s1 + $0x20] sm:$0xf]
    %v165 = vld [vmem:[%s1 + $0x24] sm:$0xf]
    %v166 = vld [vmem:[%s1 + $0x28] sm:$0xf]
    %v167 = vld [vmem:[%s1 + $0x2c] sm:$0xf]
    %v168 = vld [vmem:[%s1 + $0x30] sm:$0xf]
    %v169 = vld [vmem:[%s1 + $0x34] sm:$0xf]
    %v170 = vld [vmem:[%s1 + $0x38] sm:$0xf]
    %v171 = vld [vmem:[%s1 + $0x3c] sm:$0xf]
    %v172 = vld [vmem:[%s1 + $0x40] sm:$0xf]
    %v173 = vld [vmem:[%s1 + $0x44] sm:$0xf]
    %v174 = vld [vmem:[%s1 + $0x48] sm:$0xf]
    %v175 = vld [vmem:[%s1 + $0x4c] sm:$0xf]
    %v176 = vld [vmem:[%s1 + $0x50] sm:$0xf]
    %v177 = vld [vmem:[%s1 + $0x54] sm:$0xf]
    %v178 = vld [vmem:[%s1 + $0x58] sm:$0xf]
    %v179 = vld [vmem:[%s1 + $0x5c] sm:$0xf]
    %v180 = vld [vmem:[%s1 + $0x60] sm:$0xf]
    %v181 = vld [vmem:[%s1 + $0x64] sm:$0xf]
    %v182 = vld [vmem:[%s1 + $0x68] sm:$0xf]
    %v183 = vld [vmem:[%s1 + $0x6c] sm:$0xf]
    %v184 = vld [vmem:[%s1 + $0x70] sm:$0xf]
    %v185 = vld [vmem:[%s1 + $0x74] sm:$0xf]
    %v186 = vld [vmem:[%s1 + $0x78] sm:$0xf]
    %v187 = vld [vmem:[%s1 + $0x7c] sm:$0xf]
    %v188 = vld [vmem:[%s1 + $0x80] sm:$0xf]
    %v189 = vld [vmem:[%s1 + $0x84] sm:$0xf]
    %v190 = vld [vmem:[%s1 + $0x88] sm:$0xf]
    %v191 = vld [vmem:[%s1 + $0x8c] sm:$0xf]
    %v192 = vld [vmem:[%s1 + $0x90] sm:$0xf]
    %v193 = vld [vmem:[%s1 + $0x94] sm:$0xf]
    %v194 = vld [vmem:[%s1 + $0x98] sm:$0xf]
    %v195 = vld [vmem:[%s1 + $0x9c] sm:$0xf]
    %v196 = vld [vmem:[%s1 + $0xa0] sm:$0xf]
    %v197 = vld [vmem:[%s1 + $0xa4] sm:$0xf]
    %v198 = vld [vmem:[%s1 + $0xa8] sm:$0xf]
    %v199 = vld [vmem:[%s1 + $0xac] sm:$0xf]
    %v200 = vld [vmem:[%s1 + $0xb0] sm:$0xf]
    %v201 = vld [vmem:[%s1 + $0xb4] sm:$0xf]
    %v202 = vld [vmem:[%s1 + $0xb8] sm:$0xf]
    %v203 = vld [vmem:[%s1 + $0xbc] sm:$0xf]
    %v204 = vld [vmem:[%s1 + $0xc0] sm:$0xf]
    %v205 = vld [vmem:[%s1 + $0xc4] sm:$0xf]
    %v206 = vld [vmem:[%s1 + $0xc8] sm:$0xf]
    %v207 = vld [vmem:[%s1 + $0xcc] sm:$0xf]
    %v208 = vld [vmem:[%s1 + $0xd0] sm:$0xf]
    %v209 = vld [vmem:[%s1 + $0xd4] sm:$0xf]
    %v210 = vld [vmem:[%s1 + $0xd8] sm:$0xf]
    %v211 = vld [vmem:[%s1 + $0xdc] sm:$0xf]
    %v212 = vld [vmem:[%s1 + $0xe0] sm:$0xf]
    %v213 = vld [vmem:[%s1 + $0xe4] sm:$0xf]
    %v214 = vld [vmem:[%s1 + $0xe8] sm:$0xf]
    %v215 = vld [vmem:[%s1 + $0xec] sm:$0xf]
    %v216 = vld [vmem:[%s1 + $0xf0] sm:$0xf]
    %v217 = vld [vmem:[%s1 + $0xf4] sm:$0xf]
    %v218 = vld [vmem:[%s1 + $0xf8] sm:$0xf]
    %v219 = vld [vmem:[%s1 + $0xfc] sm:$0xf]
    %v220 = vld [vmem:[%s1 + $0x100] sm:$0xf]
    %v221 = vld [vmem:[%s1 + $0x104] sm:$0xf]
    %v222 = vld [vmem:[%s1 + $0x108] sm:$0xf]
    %v223 = vld [vmem:[%s1 + $0x10c] sm:$0xf]
    %v224 = vld [vmem:[%s1 + $0x110] sm:$0xf]
    %v225 = vld [vmem:[%s1 + $0x114] sm:$0xf]
    %v226 = vld [vmem:[%s1 + $0x118] sm:$0xf]
    %v227 = vld [vmem:[%s1 + $0x11c] sm:$0xf]
    %v228 = vld [vmem:[%s1 + $0x120] sm:$0xf]
    %v229 = vld [vmem:[%s1 + $0x124] sm:$0xf]
    %v230 = vld [vmem:[%s1 + $0x128] sm:$0xf]
    %v231 = vld [vmem:[%s1 + $0x12c] sm:$0xf]
    %v232 = vld [vmem:[%s1 + $0x130] sm:$0xf]
    %v233 = vld [vmem:[%s1 + $0x134] sm:$0xf]
    %v234 = vld [vmem:[%s1 + $0x138] sm:$0xf]
    %v235 = vld [vmem:[%s1 + $0x13c] sm:$0xf]
    %v236 = vld [vmem:[%s1 + $0x140] sm:$0xf]
    %v237 = vld [vmem:[%s1 + $0x144] sm:$0xf]
    %v238 = vld [vmem:[%s1 + $0x148] sm:$0xf]
    %v239 = vld [vmem:[%s1 + $0x14c] sm:$0xf]
    %v240 = vld [vmem:[%s1 + $0x150] sm:$0xf]
    %v241 = vld [vmem:[%s1 + $0x154] sm:$0xf]
    %v242 = vld [vmem:[%s1 + $0x158] sm:$0xf]
    %v243 = vld [vmem:[%s1 + $0x15c] sm:$0xf]
    %v244 = vld [vmem:[%s1 + $0x160] sm:$0xf]
    %v245 = vld [vmem:[%s1 + $0x164] sm:$0xf]
    %v246 = vld [vmem:[%s1 + $0x168] sm:$0xf]
    %v247 = vld [vmem:[%s1 + $0x16c] sm:$0xf]
    %v248 = vld [vmem:[%s1 + $0x170] sm:$0xf]
    %v249 = vld [vmem:[%s1 + $0x174] sm:$0xf]
    %v250 = vld [vmem:[%s1 + $0x178] sm:$0xf]
    %v251 = vld [vmem:[%s1 + $0x17c] sm:$0xf]
    %v252 = vld [vmem:[%s1 + $0x180] sm:$0xf]
    %v253 = vld [vmem:[%s1 + $0x184] sm:$0xf]
    %v254 = vld [vmem:[%s1 + $0x188] sm:$0xf]
    %v255 = vld [vmem:[%s1 + $0x18c] sm:$0xf]
    %v256 = vld [vmem:[%s1 + $0x190] sm:$0xf]
    %v257 = vld [vmem:[%s1 + $0x194] sm:$0xf]
    %v258 = vld [vmem:[%s1 + $0x198] sm:$0xf]
    %v259 = vld [vmem:[%s1 + $0x19c] sm:$0xf]
    %v260 = vld [vmem:[%s1 + $0x1a0] sm:$0xf]
    %v261 = vld [vmem:[%s1 + $0x1a4] sm:$0xf]
    %v262 = vld [vmem:[%s1 + $0x1a8] sm:$0xf]
    %v263 = vld [vmem:[%s1 + $0x1ac] sm:$0xf]
    %v264 = vld [vmem:[%s1 + $0x1b0] sm:$0xf]
    %v265 = vld [vmem:[%s1 + $0x1b4] sm:$0xf]
    %v266 = vld [vmem:[%s1 + $0x1b8] sm:$0xf]
    %v267 = vld [vmem:[%s1 + $0x1bc] sm:$0xf]
    %v268 = vld [vmem:[%s1 + $0x1c0] sm:$0xf]
    %v269 = vld [vmem:[%s1 + $0x1c4] sm:$0xf]
    %v270 = vld [vmem:[%s1 + $0x1c8] sm:$0xf]
    %v271 = vld [vmem:[%s1 + $0x1cc] sm:$0xf]
    %v272 = vld [vmem:[%s1 + $0x1d0] sm:$0xf]
    %v273 = vld [vmem:[%s1 + $0x1d4] sm:$0xf]
    %v274 = vld [vmem:[%s1 + $0x1d8] sm:$0xf]
    %v275 = vld [vmem:[%s1 + $0x1dc] sm:$0xf]
    %v276 = vld [vmem:[%s1 + $0x1e0] sm:$0xf]
    %v277 = vld [vmem:[%s1 + $0x1e4] sm:$0xf]
    %v278 = vld [vmem:[%s1 + $0x1e8] sm:$0xf]
    %v279 = vld [vmem:[%s1 + $0x1ec] sm:$0xf]
    %v280 = vld [vmem:[%s1 + $0x1f0] sm:$0xf]
    %v281 = vld [vmem:[%s1 + $0x1f4] sm:$0xf]
    %v282 = vld [vmem:[%s1 + $0x1f8] sm:$0xf]
    %v283 = vld [vmem:[%s1 + $0x1fc] sm:$0xf]
    %v284 = vld [vmem:[%s1 + $0x200] sm:$0xf]
    %v285 = vld [vmem:[%s1 + $0x204] sm:$0xf]
    %v286 = vld [vmem:[%s1 + $0x208] sm:$0xf]
    %v287 = vld [vmem:[%s1 + $0x20c] sm:$0xf]
    %v288 = vld [vmem:[%s1 + $0x210] sm:$0xf]
    %v289 = vld [vmem:[%s1 + $0x214] sm:$0xf]
    %v290 = vld [vmem:[%s1 + $0x218] sm:$0xf]
    %v291 = vld [vmem:[%s1 + $0x21c] sm:$0xf]
    %v292 = vld [vmem:[%s1 + $0x220] sm:$0xf]
    %v293 = vld [vmem:[%s1 + $0x224] sm:$0xf]
    %v294 = vld [vmem:[%s1 + $0x228] sm:$0xf]
    %v295 = vld [vmem:[%s1 + $0x22c] sm:$0xf]
    %v296 = vld [vmem:[%s1 + $0x230] sm:$0xf]
    %v297 = vld [vmem:[%s1 + $0x234] sm:$0xf]
    %v298 = vld [vmem:[%s1 + $0x238] sm:$0xf]
    %v299 = vld [vmem:[%s1 + $0x23c] sm:$0xf]
    %v300 = vld [vmem:[%s1 + $0x240] sm:$0xf]
    %v301 = vld [vmem:[%s1 + $0x244] sm:$0xf]
    %v302 = vld [vmem:[%s1 + $0x248] sm:$0xf]
    %v303 = vld [vmem:[%s1 + $0x24c] sm:$0xf]
    %v304 = vld [vmem:[%s1 + $0x250] sm:$0xf]
    %v305 = vld [vmem:[%s1 + $0x254] sm:$0xf]
    %v306 = vld [vmem:[%s1 + $0x258] sm:$0xf]
    %v307 = vld [vmem:[%s1 + $0x25c] sm:$0xf]
    %v308 = vld [vmem:[%s1 + $0x260] sm:$0xf]
    %v309 = vld [vmem:[%s1 + $0x264] sm:$0xf]
    %v310 = vld [vmem:[%s1 + $0x268] sm:$0xf]
    %v311 = vld [vmem:[%s1 + $0x26c] sm:$0xf]
    %v312 = vld [vmem:[%s1 + $0x270] sm:$0xf]
    %v313 = vld [vmem:[%s1 + $0x274] sm:$0xf]
    %v314 = vld [vmem:[%s1 + $0x278] sm:$0xf]
    %v315 = vld [vmem:[%s1 + $0x27c] sm:$0xf]
    %v316 = vld [vmem:[%s2] sm:$0x1]
    %v318 = vlaneseq
    %v319 = vshrl.u32 %v318, 7
    %v320 = vsub.s32 0, %v319
    %v321 = vrot.slane %v316, %v320
    %v483 = vunpack.c.l.b16 %v156
    %v484 = vunpack.c.l.b16 %v157
    %v485 = vunpack.c.l.b16 %v158
    %v486 = vunpack.c.l.b16 %v159
    %v487 = vunpack.c.l.b16 %v160
    %v488 = vunpack.c.l.b16 %v161
    %v489 = vunpack.c.l.b16 %v162
    %v490 = vunpack.c.l.b16 %v163
    %v491 = vunpack.c.l.b16 %v164
    %v492 = vunpack.c.l.b16 %v165
    %v493 = vunpack.c.l.b16 %v166
    %v494 = vunpack.c.l.b16 %v167
    %v495 = vunpack.c.l.b16 %v168
    %v496 = vunpack.c.l.b16 %v169
    %v497 = vunpack.c.l.b16 %v170
    %v498 = vunpack.c.l.b16 %v171
    %v499 = vunpack.c.l.b16 %v172
    %v500 = vunpack.c.l.b16 %v173
    %v501 = vunpack.c.l.b16 %v174
    %v502 = vunpack.c.l.b16 %v175
    %v503 = vunpack.c.l.b16 %v176
    %v504 = vunpack.c.l.b16 %v177
    %v505 = vunpack.c.l.b16 %v178
    %v506 = vunpack.c.l.b16 %v179
    %v507 = vunpack.c.l.b16 %v180
    %v508 = vunpack.c.l.b16 %v181
    %v509 = vunpack.c.l.b16 %v182
    %v510 = vunpack.c.l.b16 %v183
    %v511 = vunpack.c.l.b16 %v184
    %v512 = vunpack.c.l.b16 %v185
    %v513 = vunpack.c.l.b16 %v186
    %v514 = vunpack.c.l.b16 %v187
    %v515 = vunpack.c.l.b16 %v188
    %v516 = vunpack.c.l.b16 %v189
    %v517 = vunpack.c.l.b16 %v190
    %v518 = vunpack.c.l.b16 %v191
    %v519 = vunpack.c.l.b16 %v192
    %v520 = vunpack.c.l.b16 %v193
    %v521 = vunpack.c.l.b16 %v194
    %v522 = vunpack.c.l.b16 %v195
    %v523 = vunpack.c.l.b16 %v196
    %v524 = vunpack.c.l.b16 %v197
    %v525 = vunpack.c.l.b16 %v198
    %v526 = vunpack.c.l.b16 %v199
    %v527 = vunpack.c.l.b16 %v200
    %v528 = vunpack.c.l.b16 %v201
    %v529 = vunpack.c.l.b16 %v202
    %v530 = vunpack.c.l.b16 %v203
    %v531 = vunpack.c.l.b16 %v204
    %v532 = vunpack.c.l.b16 %v205
    %v533 = vunpack.c.l.b16 %v206
    %v534 = vunpack.c.l.b16 %v207
    %v535 = vunpack.c.l.b16 %v208
    %v536 = vunpack.c.l.b16 %v209
    %v537 = vunpack.c.l.b16 %v210
    %v538 = vunpack.c.l.b16 %v211
    %v539 = vunpack.c.l.b16 %v212
    %v540 = vunpack.c.l.b16 %v213
    %v541 = vunpack.c.l.b16 %v214
    %v542 = vunpack.c.l.b16 %v215
    %v543 = vunpack.c.l.b16 %v216
    %v544 = vunpack.c.l.b16 %v217
    %v545 = vunpack.c.l.b16 %v218
    %v546 = vunpack.c.l.b16 %v219
    %v547 = vunpack.c.l.b16 %v220
    %v548 = vunpack.c.l.b16 %v221
    %v549 = vunpack.c.l.b16 %v222
    %v550 = vunpack.c.l.b16 %v223
    %v551 = vunpack.c.l.b16 %v224
    %v552 = vunpack.c.l.b16 %v225
    %v553 = vunpack.c.l.b16 %v226
    %v554 = vunpack.c.l.b16 %v227
    %v555 = vunpack.c.l.b16 %v228
    %v556 = vunpack.c.l.b16 %v229
    %v557 = vunpack.c.l.b16 %v230
    %v558 = vunpack.c.l.b16 %v231
    %v559 = vunpack.c.l.b16 %v232
    %v560 = vunpack.c.l.b16 %v233
    %v561 = vunpack.c.l.b16 %v234
    %v562 = vunpack.c.l.b16 %v235
    %v563 = vunpack.c.l.b16 %v236
    %v564 = vunpack.c.l.b16 %v237
    %v565 = vunpack.c.l.b16 %v238
    %v566 = vunpack.c.l.b16 %v239
    %v567 = vunpack.c.l.b16 %v240
    %v568 = vunpack.c.l.b16 %v241
    %v569 = vunpack.c.l.b16 %v242
    %v570 = vunpack.c.l.b16 %v243
    %v571 = vunpack.c.l.b16 %v244
    %v572 = vunpack.c.l.b16 %v245
    %v573 = vunpack.c.l.b16 %v246
    %v574 = vunpack.c.l.b16 %v247
    %v575 = vunpack.c.l.b16 %v248
    %v576 = vunpack.c.l.b16 %v249
    %v577 = vunpack.c.l.b16 %v250
    %v578 = vunpack.c.l.b16 %v251
    %v579 = vunpack.c.l.b16 %v252
    %v580 = vunpack.c.l.b16 %v253
    %v581 = vunpack.c.l.b16 %v254
    %v582 = vunpack.c.l.b16 %v255
    %v583 = vunpack.c.l.b16 %v256
    %v584 = vunpack.c.l.b16 %v257
    %v585 = vunpack.c.l.b16 %v258
    %v586 = vunpack.c.l.b16 %v259
    %v587 = vunpack.c.l.b16 %v260
    %v588 = vunpack.c.l.b16 %v261
    %v589 = vunpack.c.l.b16 %v262
    %v590 = vunpack.c.l.b16 %v263
    %v591 = vunpack.c.l.b16 %v264
    %v592 = vunpack.c.l.b16 %v265
    %v593 = vunpack.c.l.b16 %v266
    %v594 = vunpack.c.l.b16 %v267
    %v595 = vunpack.c.l.b16 %v268
    %v596 = vunpack.c.l.b16 %v269
    %v597 = vunpack.c.l.b16 %v270
    %v598 = vunpack.c.l.b16 %v271
    %v599 = vunpack.c.l.b16 %v272
    %v600 = vunpack.c.l.b16 %v273
    %v601 = vunpack.c.l.b16 %v274
    %v602 = vunpack.c.l.b16 %v275
    %v603 = vunpack.c.l.b16 %v276
    %v604 = vunpack.c.l.b16 %v277
    %v605 = vunpack.c.l.b16 %v278
    %v606 = vunpack.c.l.b16 %v279
    %v607 = vunpack.c.l.b16 %v280
    %v608 = vunpack.c.l.b16 %v281
    %v609 = vunpack.c.l.b16 %v282
    %v610 = vunpack.c.l.b16 %v283
    %v611 = vunpack.c.l.b16 %v284
    %v612 = vunpack.c.l.b16 %v285
    %v613 = vunpack.c.l.b16 %v286
    %v614 = vunpack.c.l.b16 %v287
    %v615 = vunpack.c.l.b16 %v288
    %v616 = vunpack.c.l.b16 %v289
    %v617 = vunpack.c.l.b16 %v290
    %v618 = vunpack.c.l.b16 %v291
    %v619 = vunpack.c.l.b16 %v292
    %v620 = vunpack.c.l.b16 %v293
    %v621 = vunpack.c.l.b16 %v294
    %v622 = vunpack.c.l.b16 %v295
    %v623 = vunpack.c.l.b16 %v296
    %v624 = vunpack.c.l.b16 %v297
    %v625 = vunpack.c.l.b16 %v298
    %v626 = vunpack.c.l.b16 %v299
    %v627 = vunpack.c.l.b16 %v300
    %v628 = vunpack.c.l.b16 %v301
    %v629 = vunpack.c.l.b16 %v302
    %v630 = vunpack.c.l.b16 %v303
    %v631 = vunpack.c.l.b16 %v304
    %v632 = vunpack.c.l.b16 %v305
    %v633 = vunpack.c.l.b16 %v306
    %v634 = vunpack.c.l.b16 %v307
    %v635 = vunpack.c.l.b16 %v308
    %v636 = vunpack.c.l.b16 %v309
    %v637 = vunpack.c.l.b16 %v310
    %v638 = vunpack.c.l.b16 %v311
    %v639 = vunpack.c.l.b16 %v312
    %v640 = vunpack.c.l.b16 %v313
    %v641 = vunpack.c.l.b16 %v314
    %v642 = vunpack.c.l.b16 %v315
    %v643 = vpack.c.b16 %v484, %v483
    %v644 = vpack.c.b16 %v486, %v485
    %v645 = vpack.c.b16 %v488, %v487
    %v646 = vpack.c.b16 %v490, %v489
    %v647 = vpack.c.b16 %v492, %v491
    %v648 = vpack.c.b16 %v494, %v493
    %v649 = vpack.c.b16 %v496, %v495
    %v650 = vpack.c.b16 %v498, %v497
    %v651 = vpack.c.b16 %v500, %v499
    %v652 = vpack.c.b16 %v502, %v501
    %v653 = vpack.c.b16 %v504, %v503
    %v654 = vpack.c.b16 %v506, %v505
    %v655 = vpack.c.b16 %v508, %v507
    %v656 = vpack.c.b16 %v510, %v509
    %v657 = vpack.c.b16 %v512, %v511
    %v658 = vpack.c.b16 %v514, %v513
    %v659 = vpack.c.b16 %v516, %v515
    %v660 = vpack.c.b16 %v518, %v517
    %v661 = vpack.c.b16 %v520, %v519
    %v662 = vpack.c.b16 %v522, %v521
    %v663 = vpack.c.b16 %v524, %v523
    %v664 = vpack.c.b16 %v526, %v525
    %v665 = vpack.c.b16 %v528, %v527
    %v666 = vpack.c.b16 %v530, %v529
    %v667 = vpack.c.b16 %v532, %v531
    %v668 = vpack.c.b16 %v534, %v533
    %v669 = vpack.c.b16 %v536, %v535
    %v670 = vpack.c.b16 %v538, %v537
    %v671 = vpack.c.b16 %v540, %v539
    %v672 = vpack.c.b16 %v542, %v541
    %v673 = vpack.c.b16 %v544, %v543
    %v674 = vpack.c.b16 %v546, %v545
    %v675 = vpack.c.b16 %v548, %v547
    %v676 = vpack.c.b16 %v550, %v549
    %v677 = vpack.c.b16 %v552, %v551
    %v678 = vpack.c.b16 %v554, %v553
    %v679 = vpack.c.b16 %v556, %v555
    %v680 = vpack.c.b16 %v558, %v557
    %v681 = vpack.c.b16 %v560, %v559
    %v682 = vpack.c.b16 %v562, %v561
    %v683 = vpack.c.b16 %v564, %v563
    %v684 = vpack.c.b16 %v566, %v565
    %v685 = vpack.c.b16 %v568, %v567
    %v686 = vpack.c.b16 %v570, %v569
    %v687 = vpack.c.b16 %v572, %v571
    %v688 = vpack.c.b16 %v574, %v573
    %v689 = vpack.c.b16 %v576, %v575
    %v690 = vpack.c.b16 %v578, %v577
    %v691 = vpack.c.b16 %v580, %v579
    %v692 = vpack.c.b16 %v582, %v581
    %v693 = vpack.c.b16 %v584, %v583
    %v694 = vpack.c.b16 %v586, %v585
    %v695 = vpack.c.b16 %v588, %v587
    %v696 = vpack.c.b16 %v590, %v589
    %v697 = vpack.c.b16 %v592, %v591
    %v698 = vpack.c.b16 %v594, %v593
    %v699 = vpack.c.b16 %v596, %v595
    %v700 = vpack.c.b16 %v598, %v597
    %v701 = vpack.c.b16 %v600, %v599
    %v702 = vpack.c.b16 %v602, %v601
    %v703 = vpack.c.b16 %v604, %v603
    %v704 = vpack.c.b16 %v606, %v605
    %v705 = vpack.c.b16 %v608, %v607
    %v706 = vpack.c.b16 %v610, %v609
    %v707 = vpack.c.b16 %v612, %v611
    %v708 = vpack.c.b16 %v614, %v613
    %v709 = vpack.c.b16 %v616, %v615
    %v710 = vpack.c.b16 %v618, %v617
    %v711 = vpack.c.b16 %v620, %v619
    %v712 = vpack.c.b16 %v622, %v621
    %v713 = vpack.c.b16 %v624, %v623
    %v714 = vpack.c.b16 %v626, %v625
    %v715 = vpack.c.b16 %v628, %v627
    %v716 = vpack.c.b16 %v630, %v629
    %v717 = vpack.c.b16 %v632, %v631
    %v718 = vpack.c.b16 %v634, %v633
    %v719 = vpack.c.b16 %v636, %v635
    %v720 = vpack.c.b16 %v638, %v637
    %v721 = vpack.c.b16 %v640, %v639
    %v722 = vpack.c.b16 %v642, %v641
    %803 = vmatprep.subr.bf16.mxu0 0
    %804 = vmatpush1.bf16.msra.mxu0 %v643
    %805 = vmatprep.subr.bf16.mxu0 0
    %806 = vmatpush1.bf16.msra.mxu0 %v644
    %807 = vmatprep.subr.bf16.mxu0 0
    %808 = vmatpush1.bf16.msra.mxu0 %v645
    %809 = vmatprep.subr.bf16.mxu0 0
    %810 = vmatpush1.bf16.msra.mxu0 %v646
    %811 = vmatprep.subr.bf16.mxu0 0
    %812 = vmatpush1.bf16.msra.mxu0 %v647
    %813 = vmatprep.subr.bf16.mxu0 0
    %814 = vmatpush1.bf16.msra.mxu0 %v648
    %815 = vmatprep.subr.bf16.mxu0 0
    %816 = vmatpush1.bf16.msra.mxu0 %v649
    %817 = vmatprep.subr.bf16.mxu0 0
    %818 = vmatpush1.bf16.msra.mxu0 %v650
    %819 = vmatprep.subr.bf16.mxu0 0
    %820 = vmatpush1.bf16.msra.mxu0 %v651
    %821 = vmatprep.subr.bf16.mxu0 0
    %822 = vmatpush1.bf16.msra.mxu0 %v652
    %823 = vmatprep.subr.bf16.mxu0 0
    %824 = vmatpush1.bf16.msra.mxu0 %v653
    %825 = vmatprep.subr.bf16.mxu0 0
    %826 = vmatpush1.bf16.msra.mxu0 %v654
    %827 = vmatprep.subr.bf16.mxu0 0
    %828 = vmatpush1.bf16.msra.mxu0 %v655
    %829 = vmatprep.subr.bf16.mxu0 0
    %830 = vmatpush1.bf16.msra.mxu0 %v656
    %831 = vmatprep.subr.bf16.mxu0 0
    %832 = vmatpush1.bf16.msra.mxu0 %v657
    %833 = vmatprep.subr.bf16.mxu0 0
    %834 = vmatpush1.bf16.msra.mxu0 %v658
    %835 = vmatprep.mubr.bf16.mxu0 %v147
    %836 = vmatmul.mubr.bf16.gmra.mrb[0].mxu0 %v146
    %v837 = vpop.f32.mrb[0].mxu0
    %v838 = vadd.f32 %v321, %v837
    %v839 = vpop.f32.mrb[0].mxu0
    %v840 = vpop.f32.mrb[0].mxu0
    %v841 = vpop.f32.mrb[0].mxu0
    %842 = vdwg.mxu0
    %843 = vmatprep.subr.bf16.mxu0 0
    %844 = vmatpush1.bf16.msra.mxu0 %v659
    %845 = vmatprep.subr.bf16.mxu0 0
    %846 = vmatpush1.bf16.msra.mxu0 %v660
    %847 = vmatprep.subr.bf16.mxu0 0
    %848 = vmatpush1.bf16.msra.mxu0 %v661
    %849 = vmatprep.subr.bf16.mxu0 0
    %850 = vmatpush1.bf16.msra.mxu0 %v662
    %851 = vmatprep.subr.bf16.mxu0 0
    %852 = vmatpush1.bf16.msra.mxu0 %v663
    %853 = vmatprep.subr.bf16.mxu0 0
    %854 = vmatpush1.bf16.msra.mxu0 %v664
    %855 = vmatprep.subr.bf16.mxu0 0
    %856 = vmatpush1.bf16.msra.mxu0 %v665
    %857 = vmatprep.subr.bf16.mxu0 0
    %858 = vmatpush1.bf16.msra.mxu0 %v666
    %859 = vmatprep.subr.bf16.mxu0 0
    %860 = vmatpush1.bf16.msra.mxu0 %v667
    %861 = vmatprep.subr.bf16.mxu0 0
    %862 = vmatpush1.bf16.msra.mxu0 %v668
    %863 = vmatprep.subr.bf16.mxu0 0
    %864 = vmatpush1.bf16.msra.mxu0 %v669
    %865 = vmatprep.subr.bf16.mxu0 0
    %866 = vmatpush1.bf16.msra.mxu0 %v670
    %867 = vmatprep.subr.bf16.mxu0 0
    %868 = vmatpush1.bf16.msra.mxu0 %v671
    %869 = vmatprep.subr.bf16.mxu0 0
    %870 = vmatpush1.bf16.msra.mxu0 %v672
    %871 = vmatprep.subr.bf16.mxu0 0
    %872 = vmatpush1.bf16.msra.mxu0 %v673
    %873 = vmatprep.subr.bf16.mxu0 0
    %874 = vmatpush1.bf16.msra.mxu0 %v674
    %875 = vmatprep.mubr.bf16.mxu0 %v149
    %876 = vmatmul.mubr.bf16.gmra.mrb[0].mxu0 %v148
    %v877 = vpop.f32.mrb[0].mxu0
    %v878 = vadd.f32 %v838, %v877
    %v879 = vpop.f32.mrb[0].mxu0
    %v880 = vpop.f32.mrb[0].mxu0
    %v881 = vpop.f32.mrb[0].mxu0
    %882 = vdwg.mxu0
    %883 = vmatprep.subr.bf16.mxu0 0
    %884 = vmatpush1.bf16.msra.mxu0 %v675
    %885 = vmatprep.subr.bf16.mxu0 0
    %886 = vmatpush1.bf16.msra.mxu0 %v676
    %887 = vmatprep.subr.bf16.mxu0 0
    %888 = vmatpush1.bf16.msra.mxu0 %v677
    %889 = vmatprep.subr.bf16.mxu0 0
    %890 = vmatpush1.bf16.msra.mxu0 %v678
    %891 = vmatprep.subr.bf16.mxu0 0
    %892 = vmatpush1.bf16.msra.mxu0 %v679
    %893 = vmatprep.subr.bf16.mxu0 0
    %894 = vmatpush1.bf16.msra.mxu0 %v680
    %895 = vmatprep.subr.bf16.mxu0 0
    %896 = vmatpush1.bf16.msra.mxu0 %v681
    %897 = vmatprep.subr.bf16.mxu0 0
    %898 = vmatpush1.bf16.msra.mxu0 %v682
    %899 = vmatprep.subr.bf16.mxu0 0
    %900 = vmatpush1.bf16.msra.mxu0 %v683
    %901 = vmatprep.subr.bf16.mxu0 0
    %902 = vmatpush1.bf16.msra.mxu0 %v684
    %903 = vmatprep.subr.bf16.mxu0 0
    %904 = vmatpush1.bf16.msra.mxu0 %v685
    %905 = vmatprep.subr.bf16.mxu0 0
    %906 = vmatpush1.bf16.msra.mxu0 %v686
    %907 = vmatprep.subr.bf16.mxu0 0
    %908 = vmatpush1.bf16.msra.mxu0 %v687
    %909 = vmatprep.subr.bf16.mxu0 0
    %910 = vmatpush1.bf16.msra.mxu0 %v688
    %911 = vmatprep.subr.bf16.mxu0 0
    %912 = vmatpush1.bf16.msra.mxu0 %v689
    %913 = vmatprep.subr.bf16.mxu0 0
    %914 = vmatpush1.bf16.msra.mxu0 %v690
    %915 = vmatprep.mubr.bf16.mxu0 %v151
    %916 = vmatmul.mubr.bf16.gmra.mrb[0].mxu0 %v150
    %v917 = vpop.f32.mrb[0].mxu0
    %v918 = vadd.f32 %v878, %v917
    %v919 = vpop.f32.mrb[0].mxu0
    %v920 = vpop.f32.mrb[0].mxu0
    %v921 = vpop.f32.mrb[0].mxu0
    %922 = vdwg.mxu0
    %923 = vmatprep.subr.bf16.mxu0 0
    %924 = vmatpush1.bf16.msra.mxu0 %v691
    %925 = vmatprep.subr.bf16.mxu0 0
    %926 = vmatpush1.bf16.msra.mxu0 %v692
    %927 = vmatprep.subr.bf16.mxu0 0
    %928 = vmatpush1.bf16.msra.mxu0 %v693
    %929 = vmatprep.subr.bf16.mxu0 0
    %930 = vmatpush1.bf16.msra.mxu0 %v694
    %931 = vmatprep.subr.bf16.mxu0 0
    %932 = vmatpush1.bf16.msra.mxu0 %v695
    %933 = vmatprep.subr.bf16.mxu0 0
    %934 = vmatpush1.bf16.msra.mxu0 %v696
    %935 = vmatprep.subr.bf16.mxu0 0
    %936 = vmatpush1.bf16.msra.mxu0 %v697
    %937 = vmatprep.subr.bf16.mxu0 0
    %938 = vmatpush1.bf16.msra.mxu0 %v698
    %939 = vmatprep.subr.bf16.mxu0 0
    %940 = vmatpush1.bf16.msra.mxu0 %v699
    %941 = vmatprep.subr.bf16.mxu0 0
    %942 = vmatpush1.bf16.msra.mxu0 %v700
    %943 = vmatprep.subr.bf16.mxu0 0
    %944 = vmatpush1.bf16.msra.mxu0 %v701
    %945 = vmatprep.subr.bf16.mxu0 0
    %946 = vmatpush1.bf16.msra.mxu0 %v702
    %947 = vmatprep.subr.bf16.mxu0 0
    %948 = vmatpush1.bf16.msra.mxu0 %v703
    %949 = vmatprep.subr.bf16.mxu0 0
    %950 = vmatpush1.bf16.msra.mxu0 %v704
    %951 = vmatprep.subr.bf16.mxu0 0
    %952 = vmatpush1.bf16.msra.mxu0 %v705
    %953 = vmatprep.subr.bf16.mxu0 0
    %954 = vmatpush1.bf16.msra.mxu0 %v706
    %955 = vmatprep.mubr.bf16.mxu0 %v153
    %956 = vmatmul.mubr.bf16.gmra.mrb[0].mxu0 %v152
    %v957 = vpop.f32.mrb[0].mxu0
    %v958 = vadd.f32 %v918, %v957
    %v959 = vpop.f32.mrb[0].mxu0
    %v960 = vpop.f32.mrb[0].mxu0
    %v961 = vpop.f32.mrb[0].mxu0
    %962 = vdwg.mxu0
    %963 = vmatprep.subr.bf16.mxu0 0
    %964 = vmatpush1.bf16.msra.mxu0 %v707
    %965 = vmatprep.subr.bf16.mxu0 0
    %966 = vmatpush1.bf16.msra.mxu0 %v708
    %967 = vmatprep.subr.bf16.mxu0 0
    %968 = vmatpush1.bf16.msra.mxu0 %v709
    %969 = vmatprep.subr.bf16.mxu0 0
    %970 = vmatpush1.bf16.msra.mxu0 %v710
    %971 = vmatprep.subr.bf16.mxu0 0
    %972 = vmatpush1.bf16.msra.mxu0 %v711
    %973 = vmatprep.subr.bf16.mxu0 0
    %974 = vmatpush1.bf16.msra.mxu0 %v712
    %975 = vmatprep.subr.bf16.mxu0 0
    %976 = vmatpush1.bf16.msra.mxu0 %v713
    %977 = vmatprep.subr.bf16.mxu0 0
    %978 = vmatpush1.bf16.msra.mxu0 %v714
    %979 = vmatprep.subr.bf16.mxu0 0
    %980 = vmatpush1.bf16.msra.mxu0 %v715
    %981 = vmatprep.subr.bf16.mxu0 0
    %982 = vmatpush1.bf16.msra.mxu0 %v716
    %983 = vmatprep.subr.bf16.mxu0 0
    %984 = vmatpush1.bf16.msra.mxu0 %v717
    %985 = vmatprep.subr.bf16.mxu0 0
    %986 = vmatpush1.bf16.msra.mxu0 %v718
    %987 = vmatprep.subr.bf16.mxu0 0
    %988 = vmatpush1.bf16.msra.mxu0 %v719
    %989 = vmatprep.subr.bf16.mxu0 0
    %990 = vmatpush1.bf16.msra.mxu0 %v720
    %991 = vmatprep.subr.bf16.mxu0 0
    %992 = vmatpush1.bf16.msra.mxu0 %v721
    %993 = vmatprep.subr.bf16.mxu0 0
    %994 = vmatpush1.bf16.msra.mxu0 %v722
    %995 = vmatprep.mubr.bf16.mxu0 %v155
    %996 = vmatmul.mubr.bf16.gmra.mrb[0].mxu0 %v154
    %v997 = vpop.f32.mrb[0].mxu0
    %v998 = vadd.f32 %v958, %v997
    %v999 = vpop.f32.mrb[0].mxu0
    %v1000 = vpop.f32.mrb[0].mxu0
    %v1001 = vpop.f32.mrb[0].mxu0
    %1002 = vdwg.mxu0
    %v1003 = vsub.f32 0.0, %v998
    %v1004 = vmul.f32 %v1003, 1.442695
    %v1005 = vpow.pop %v1004
    %v1006 = vadd.f32 %v1005, 1.0
    %v1007 = vrcp.pop %v1006
    %v1008 = vmul.f32 1.0, %v1007
    %v1009 = vld [vmem:[%s3] sm:$0xff]
    %v1010 = vld [vmem:[%s3 + $0x8] sm:$0xff]
    %v1011 = vld [vmem:[%s3 + $0x10] sm:$0xff]
    %v1012 = vld [vmem:[%s3 + $0x18] sm:$0xff]
    %v1013 = vld [vmem:[%s3 + $0x20] sm:$0xff]
    %v1014 = vld [vmem:[%s3 + $0x28] sm:$0xff]
    %v1015 = vld [vmem:[%s3 + $0x30] sm:$0xff]
    %v1016 = vld [vmem:[%s3 + $0x38] sm:$0xff]
    %v1017 = vld [vmem:[%s4] sm:$0x1]
    %v1019 = vlaneseq
    %v1020 = vshrl.u32 %v1019, 7
    %v1021 = vsub.s32 0, %v1020
    %v1022 = vrot.slane %v1017, %v1021
    %vm1024 = vcmask 523264
    %v1026 = vsel %vm1024, %v1008, 0
    %1028 = vmatprep.subr.mxu0 0.0
    %1029 = vmatpush1.msra.mxu0 %v1009
    %1030 = vmatprep.subr.mxu0 0.0
    %1031 = vmatpush1.msra.mxu0 %v1010
    %1032 = vmatprep.subr.mxu0 0.0
    %1033 = vmatpush1.msra.mxu0 %v1011
    %1034 = vmatprep.subr.mxu0 0.0
    %1035 = vmatpush1.msra.mxu0 %v1012
    %1036 = vmatprep.subr.mxu0 0.0
    %1037 = vmatpush1.msra.mxu0 %v1013
    %1038 = vmatprep.subr.mxu0 0.0
    %1039 = vmatpush1.msra.mxu0 %v1014
    %1040 = vmatprep.subr.mxu0 0.0
    %1041 = vmatpush1.msra.mxu0 %v1015
    %1042 = vmatprep.subr.mxu0 0.0
    %1043 = vmatpush1.msra.mxu0 %v1016
    %1044 = vmatprep.subr.mxu0 0.0
    %1045 = vmatpush1.msra.mxu0 0.0
    %1046 = vmatprep.subr.mxu0 0.0
    %1047 = vmatpush1.msra.mxu0 0.0
    %1048 = vmatprep.subr.mxu0 0.0
    %1049 = vmatpush1.msra.mxu0 0.0
    %1050 = vmatprep.subr.mxu0 0.0
    %1051 = vmatpush1.msra.mxu0 0.0
    %1052 = vmatprep.subr.mxu0 0.0
    %1053 = vmatpush1.msra.mxu0 0.0
    %1054 = vmatprep.subr.mxu0 0.0
    %1055 = vmatpush1.msra.mxu0 0.0
    %1056 = vmatprep.subr.mxu0 0.0
    %1057 = vmatpush1.msra.mxu0 0.0
    %1058 = vmatprep.subr.mxu0 0.0
    %1059 = vmatpush1.msra.mxu0 0.0
    %1060 = vmatprep.subr.mxu0 0.0
    %1061 = vmatpush1.msra.mxu0 0.0
    %1062 = vmatprep.subr.mxu0 0.0
    %1063 = vmatpush1.msra.mxu0 0.0
    %1064 = vmatprep.subr.mxu0 0.0
    %1065 = vmatpush1.msra.mxu0 0.0
    %1066 = vmatprep.subr.mxu0 0.0
    %1067 = vmatpush1.msra.mxu0 0.0
    %1068 = vmatprep.subr.mxu0 0.0
    %1069 = vmatpush1.msra.mxu0 0.0
    %1070 = vmatprep.subr.mxu0 0.0
    %1071 = vmatpush1.msra.mxu0 0.0
    %1072 = vmatprep.subr.mxu0 0.0
    %1073 = vmatpush1.msra.mxu0 0.0
    %1074 = vmatprep.subr.mxu0 0.0
    %1075 = vmatpush1.msra.mxu0 0.0
    %1076 = vmatprep.subr.mxu0 0.0
    %1077 = vmatpush1.msra.mxu0 0.0
    %1078 = vmatprep.subr.mxu0 0.0
    %1079 = vmatpush1.msra.mxu0 0.0
    %1080 = vmatprep.subr.mxu0 0.0
    %1081 = vmatpush1.msra.mxu0 0.0
    %1082 = vmatprep.subr.mxu0 0.0
    %1083 = vmatpush1.msra.mxu0 0.0
    %1084 = vmatprep.subr.mxu0 0.0
    %1085 = vmatpush1.msra.mxu0 0.0
    %1086 = vmatprep.subr.mxu0 0.0
    %1087 = vmatpush1.msra.mxu0 0.0
    %1088 = vmatprep.subr.mxu0 0.0
    %1089 = vmatpush1.msra.mxu0 0.0
    %1090 = vmatprep.subr.mxu0 0.0
    %1091 = vmatpush1.msra.mxu0 0.0
    %1092 = vmatprep.mubr.f32.mxu0 0.0
    %1093 = vmatmul.mubr.f32.gmra.mrb[0].mxu0 %v1026
    %v1094 = vpop.f32.mrb[0].mxu0
    %v1095 = vadd.f32 %v1022, %v1094
    %v1096 = vpop.f32.mrb[0].mxu0
    %1097 = vdwg.mxu0
    %vm1098 = vcmask 64512
    %1099 = vst.msk [vmem:[#allocation2] sm:$0xff] %vm1098, %v1095
    // Predicated region
    $region22: #{tpu_custom_call.1} parent=1 // pred_check
      _
    $region23: #{tpu_custom_call.1} parent=1 // pred_check_branch
      %1101 = sbr.rel (0) target = $region25
    $region24: #{tpu_custom_call.1} parent=1 // pred_region
      %s1103 = ssub.s32 128, 32
      %1104 = vsyncadd [#allocation3], %s1103
      %s1105 = sshll.u32 [#allocation2], 4
      %s1106 = int_to_ptr.vmem [resolvable:$true] %s1105
      %1111 = dma.vmem_to_hbm [thread:$0]  %s1106, 32, %s5, [#allocation3], 32, 32, 2
    $region25: #{tpu_custom_call.1} parent=1 // pred_fallthru
      _
    // Predicated region
    $region26: #{tpu_custom_call.1} parent=1 // pred_check
      _
    $region27: #{tpu_custom_call.1} parent=1 // pred_check_branch
      %1113 = sbr.rel (0) target = $region29
    $region28: #{tpu_custom_call.1} parent=1 // pred_region
      %1114 = dma.done [#allocation3], 128
    $region29: #{tpu_custom_call.1} parent=1 // pred_fallthru
      _
    %1115 = vsyncpa [#allocation3], 1

</llo_original>
